<compile_context>
chip_gen: v7x
topology: tpu7x:2x2x1
jax: 0.10.0
libtpu: 0.0.40
codegen_flags: <defaults>
</compile_context>

<pallas_src>
import jax
import jax.numpy as jnp
from jax.experimental import pallas as pl
from jax.experimental.pallas import tpu as pltpu

_LANE = 128
# Inputs smaller than this go through a plain fused XLA multiply: the
# pallas_call launch + per-step overhead exceeds the single elementwise op.
_FALLBACK_BYTES = 256 * 1024


def _tile_bytes() -> int:
    """Per-tile byte budget (for x OR out, single buffer). With input+output
    double buffering the VMEM footprint is ~4x this value."""
    try:
        kind = jax.devices()[0].device_kind.lower()
    except Exception:
        kind = ""
    if "v6" in kind or "v7" in kind:
        return 4 << 20   # 16 MiB double-buffered — well under the 32 MiB default scoped VMEM
    return 2 << 20       # 8 MiB double-buffered — under v5e's 16 MiB default scoped VMEM


def _drop_path_kernel(x_ref, s_ref, o_ref):
    # x_ref / o_ref: (tr, 128) lane-dense tile.
    # s_ref:         (tr, 1) float32 per-row scale (mask_b / keep_prob).
    x = x_ref[...]
    s = s_ref[...].astype(x.dtype)   # cast once per (tr, 1) column, broadcast over lanes
    o_ref[...] = x * s


def drop_path(x, drop_prob: float = 0.0, training: bool = False, *,
              key=None, force_kernel: bool = False):
    """Pallas implementation of per-sample stochastic depth (DropPath)."""
    if drop_prob == 0.0 or not training:
        return x
    if key is None:
        # A silent fixed key would drop the same samples on every call.
        raise ValueError("drop_path in training mode requires an explicit PRNG key")

    keep_prob = 1.0 - float(drop_prob)
    B = x.shape[0]
    orig_shape = x.shape
    N = 1
    for d in orig_shape[1:]:
        N *= d

    # Per-sample keep mask: floor(keep_prob + U[0,1)) == Bernoulli(keep_prob),
    # fused with 1/keep_prob so the hot path is a single multiply.
    rand = jax.random.uniform(key, (B,), dtype=jnp.float32)
    scale = jnp.floor(keep_prob + rand) * jnp.float32(1.0 / keep_prob)   # (B,) f32

    itemsize = jnp.dtype(x.dtype).itemsize
    if not force_kernel and B * N * itemsize < _FALLBACK_BYTES:
        # Small-input fallback: one fused XLA elementwise op beats kernel launch.
        bshape = (B,) + (1,) * (x.ndim - 1)
        return x * scale.reshape(bshape).astype(x.dtype)

    # Lane-dense layout: (B, N) -> (B*rows, 128). Only the <=127-element tail
    # is padded; no pad/slice ops at all when N % 128 == 0 (the common case).
    rows = pl.cdiv(N, _LANE)          # rows per sample
    n_pad = rows * _LANE
    x_flat = x.reshape(B, N)
    if n_pad != N:
        x_flat = jnp.pad(x_flat, ((0, 0), (0, n_pad - N)))
    R = B * rows
    x2 = x_flat.reshape(R, _LANE)

    # Per-row scale input: R * 4 bytes == x traffic / (32 * itemsize) — negligible.
    scale_rows = jnp.repeat(scale, rows).reshape(R, 1)

    # Tile rows: ~2-4 MiB per tile, scaled by dtype, rounded to sublane packing.
    packing = max(8, 8 * (4 // itemsize))            # 8 f32, 16 bf16, 32 int8
    tr_cap = (_tile_bytes() // (_LANE * itemsize) // packing) * packing
    if R <= tr_cap:
        tr = R                                       # single full-extent block
        n_chunks = 1
    else:
        tr = tr_cap                                  # packing-aligned chunk
        n_chunks = (R + tr - 1) // tr                # trailing partial block is masked

    out2 = pl.pallas_call(
        _drop_path_kernel,
        out_shape=jax.ShapeDtypeStruct((R, _LANE), x.dtype),
        grid=(n_chunks,),
        in_specs=[
            pl.BlockSpec((tr, _LANE), lambda i: (i, 0)),
            pl.BlockSpec((tr, 1), lambda i: (i, 0)),
        ],
        out_specs=pl.BlockSpec((tr, _LANE), lambda i: (i, 0)),
        compiler_params=pltpu.CompilerParams(
            dimension_semantics=("parallel",),
        ),
    )(x2, scale_rows)

    out_flat = out2.reshape(B, n_pad)
    if n_pad != N:
        out_flat = out_flat[:, :N]
    return out_flat.reshape(orig_shape)


class DropPath:
    """Drop paths (Stochastic Depth) per sample."""

    def __init__(self, drop_prob=None):
        self.drop_prob = drop_prob
        self.training = True

    def __call__(self, x, *, key=None, force_kernel=False):
        prob = 0.0 if self.drop_prob is None else float(self.drop_prob)
        return drop_path(x, prob, self.training, key=key, force_kernel=force_kernel)


if __name__ == "__main__":
    key = jax.random.PRNGKey(0)
    k_x, k_mask = jax.random.split(key)

    # Training mode, kernel path (force_kernel so the small demo shape still
    # exercises the Pallas kernel rather than the tiny-input fallback).
    B, C, H, W = 2, 4, 16, 16
    x = jax.random.normal(k_x, (B, C, H, W), dtype=jnp.float32)
    drop_prob = 0.25
    keep_prob = 1.0 - drop_prob

    module = DropPath(drop_prob=drop_prob)
    module.training = True
    out = jax.block_until_ready(module(x, key=k_mask, force_kernel=True))

    rand = jax.random.uniform(k_mask, (B,), dtype=jnp.float32)
    mask = jnp.floor(keep_prob + rand).reshape(B, 1, 1, 1)
    ref = x / keep_prob * mask
    assert out.shape == x.shape
    assert jnp.allclose(out, ref, atol=1e-6, rtol=1e-5), "mismatch vs reference"

    # Non-multiple-of-128 feature size (tail padding path).
    x_odd = jax.random.normal(k_x, (3, 5, 7, 11), dtype=jnp.float32)
    out_odd = jax.block_until_ready(
        drop_path(x_odd, 0.4, True, key=k_mask, force_kernel=True))
    rand_odd = jax.random.uniform(k_mask, (3,), dtype=jnp.float32)
    mask_odd = jnp.floor(0.6 + rand_odd).reshape(3, 1, 1, 1)
    ref_odd = x_odd / 0.6 * mask_odd
    assert jnp.allclose(out_odd, ref_odd, atol=1e-6, rtol=1e-5), "odd-shape mismatch"

    # Small-input fallback path (no kernel) must agree with the reference too.
    out_fb = jax.block_until_ready(module(x, key=k_mask))
    assert jnp.allclose(out_fb, ref, atol=1e-6, rtol=1e-5), "fallback mismatch"

    # Eval mode: identity (no kernel).
    module.training = False
    out_eval = jax.block_until_ready(module(x))
    assert jnp.array_equal(out_eval, x), "eval mode must be identity"

    print("KERNEL_OK")
</pallas_src>

<mosaic_0001>
module attributes {stable_mosaic.version = 11 : i64} {
  func.func @_drop_path_kernel(%arg0: i32, %arg1: memref<16x128xf32, #tpu.memory_space<vmem>>, %arg2: memref<16x1xf32, #tpu.memory_space<vmem>>, %arg3: memref<16x128xf32, #tpu.memory_space<vmem>>) attributes {dimension_semantics = [#tpu.dimension_semantics<parallel>], iteration_bounds = array<i64: 1>, scalar_prefetch = 0 : i64, scratch_operands = 0 : i64, tpu.core_type = #tpu.core_type<tc>, window_params = [{transform_indices = @transform_0, window_bounds = array<i64: 16, 128>}, {transform_indices = @transform_1, window_bounds = array<i64: 16, 1>}, {transform_indices = @transform_2, window_bounds = array<i64: 16, 128>}]} {
    %c0 = arith.constant 0 : index
    %c0_0 = arith.constant 0 : index
    %0 = vector.load %arg1[%c0, %c0_0] : memref<16x128xf32, #tpu.memory_space<vmem>>, vector<16x128xf32>
    %c0_1 = arith.constant 0 : index
    %c0_2 = arith.constant 0 : index
    %1 = vector.load %arg2[%c0_1, %c0_2] : memref<16x1xf32, #tpu.memory_space<vmem>>, vector<16x1xf32>
    %2 = vector.broadcast %1 : vector<16x1xf32> to vector<16x128xf32>
    %3 = arith.mulf %0, %2 : vector<16x128xf32>
    %c0_3 = arith.constant 0 : index
    %c0_4 = arith.constant 0 : index
    %4 = vector.load %arg3[%c0_3, %c0_4] : memref<16x128xf32, #tpu.memory_space<vmem>>, vector<16x128xf32>
    tpu.vector_store %arg3[%c0_3, %c0_4], %3 {strides = array<i32>} : memref<16x128xf32, #tpu.memory_space<vmem>>, vector<16x128xf32>,
    return
  }
  func.func @transform_0(%arg0: i32) -> (i32, i32) {
    %c0_i32 = arith.constant 0 : i32
    %c0_i32_0 = arith.constant 0 : i32
    return %arg0, %c0_i32 : i32, i32
  }
  func.func @transform_1(%arg0: i32) -> (i32, i32) {
    %c0_i32 = arith.constant 0 : i32
    %c0_i32_0 = arith.constant 0 : i32
    return %arg0, %c0_i32 : i32, i32
  }
  func.func @transform_2(%arg0: i32) -> (i32, i32) {
    %c0_i32 = arith.constant 0 : i32
    %c0_i32_0 = arith.constant 0 : i32
    return %arg0, %c0_i32 : i32, i32
  }
}

</mosaic_0001>

<llo_original>
// kernel: tpu_custom_call.1
$region0: #{tpu_custom_call.1}
  #allocation0 [shape = 'u32[]', space=smem, size = 0x4, offset = 0x4, fixed_abs, tag = 'smem constant byte address 0x4 - core index']
  #allocation1 [shape = 'u32[144,128]{1,0:T(1,128)}', space=vmem, size = 0x12000, scoped, tag = 'internal scratch']
  %s0 = inlined_call_operand.vmem [shape: f32[16,128], index: 0, kind: input, shape index: {}]
  %s1 = inlined_call_operand.vmem [shape: f32[16,1], index: 1, kind: input, shape index: {}]
  %s2 = inlined_call_operand.hbm [shape: f32[16,128], index: 2, kind: output, shape index: {}]
  %s3 = sld [smem:[#allocation0]]
  $region18: #{tpu_custom_call.1} parent=0
    _
  %s5 = ssub.s32 1, %s3
  %s6 = scalar_select 0, %s5, %s3
  $region1: #{tpu_custom_call.1} parent=0
    #allocation2 [shape = 'u8[8192]{0}', space=vmem, size = 0x2000, scoped, tag = 'output window, operand 0, single buffered']
    #allocation3 [shape = 's32[1]{0}', space=sflag, size = 0x4, scoped, tag = 'scoped memory for tpu_custom_call.1']
    %7 = vsyncpa [#allocation3], 0
    // Predicated region
    $region2: #{tpu_custom_call.1} parent=1 // pred_check
      _
    $region3: #{tpu_custom_call.1} parent=1 // pred_check_branch
      %9 = sbr.rel (0) target = $region5
    $region4: #{tpu_custom_call.1} parent=1 // pred_region
      _
    $region5: #{tpu_custom_call.1} parent=1 // pred_fallthru
      _
    // Predicated region
    $region6: #{tpu_custom_call.1} parent=1 // pred_check
      _
    $region7: #{tpu_custom_call.1} parent=1 // pred_check_branch
      %11 = sbr.rel (0) target = $region9
    $region8: #{tpu_custom_call.1} parent=1 // pred_region
      _
    $region9: #{tpu_custom_call.1} parent=1 // pred_fallthru
      _
    %v12 = vld [vmem:[%s0] sm:$0xff]
    %v13 = vld [vmem:[%s0 + $0x8] sm:$0xff]
    %v14 = vld [vmem:[%s1] sm:$0xff]
    %v15 = vld [vmem:[%s1 + $0x8] sm:$0xff]
    %17 = vset.pattern.permute.xlu0 0
    %18 = vperm.xlu0 %17, %v14
    %v19 = vpop.permute.xlu0 %18
    %22 = vset.pattern.permute.xlu0 0
    %23 = vperm.xlu0 %22, %v15
    %v24 = vpop.permute.xlu0 %23
    %v26 = vmul.f32 %v12, %v19
    %v27 = vmul.f32 %v13, %v24
    %28 = vst [vmem:[#allocation2] sm:$0xff] %v26
    %29 = vst [vmem:[#allocation2 + $0x8] sm:$0xff] %v27
    // Predicated region
    $region10: #{tpu_custom_call.1} parent=1 // pred_check
      _
    $region11: #{tpu_custom_call.1} parent=1 // pred_check_branch
      %31 = sbr.rel (0) target = $region13
    $region12: #{tpu_custom_call.1} parent=1 // pred_region
      %s33 = ssub.s32 256, 256
      %34 = vsyncadd [#allocation3], %s33
      %s35 = sshll.u32 [#allocation2], 4
      %s36 = int_to_ptr.vmem [resolvable:$true] %s35
      %41 = dma.vmem_to_hbm [thread:$0]  %s36, 256, %s2, [#allocation3], 128, 128, 8
    $region13: #{tpu_custom_call.1} parent=1 // pred_fallthru
      _
    // Predicated region
    $region14: #{tpu_custom_call.1} parent=1 // pred_check
      _
    $region15: #{tpu_custom_call.1} parent=1 // pred_check_branch
      %43 = sbr.rel (0) target = $region17
    $region16: #{tpu_custom_call.1} parent=1 // pred_region
      %44 = dma.done [#allocation3], 256
    $region17: #{tpu_custom_call.1} parent=1 // pred_fallthru
      _
    %45 = vsyncpa [#allocation3], 1

</llo_original>
